<compile_context>
chip_gen: v6e
topology: v6e:2x2x1
jax: 0.10.0
libtpu: 0.0.40
codegen_flags: <defaults>
</compile_context>

<pallas_src>
import jax
import jax.numpy as jnp
from jax.experimental import pallas as pl
from jax.experimental.pallas import tpu as pltpu

# ---- synthetic config (BLOCK_OPTIONS / *_BINS are not provided; choose
#      small deterministic sizes consistent with the module structure) -------
CONCEPT_BIN_LIST = [f"concept_bin_{i}" for i in range(6)]           # 6 bins
LEARNING_STYLE_BIN_LIST = [f"style_bin_{i}" for i in range(4)]      # 4 bins
BLOCK_SIZES = [3, 4, 5, 2]                                          # 4 heads
HIDDEN_SIZE = 64
INPUT_DIM = len(CONCEPT_BIN_LIST) + len(LEARNING_STYLE_BIN_LIST) + 4  # 14
TOTAL_HEAD_OUT = sum(BLOCK_SIZES)                                     # 14

# lane-dense padded sizes (do NOT raise to 256 — never MXU-bound)
H_PAD = 128     # hidden 64 -> 128 lanes
OUT_PAD = 128   # fused head output 14 -> 128 lanes
TB_CAP = 2048   # row-tile cap: keeps f32 intermediates inside v5e's 16 MiB VMEM


def _policy_kernel(x_ref, w1_ref, b1_ref, w2_ref, b2_ref, wh_ref, bh_ref,
                   out_ref):
    # in-kernel cast of the f32 input tile to the bf16 MXU operand dtype
    # (saves a separate wrapper-side XLA cast pass over x in HBM)
    xb = x_ref[...].astype(jnp.bfloat16)
    # trunk layer 1: Linear(INPUT_DIM, H_PAD) + ReLU   (Dropout -> identity)
    h1 = jnp.dot(xb, w1_ref[...], preferred_element_type=jnp.float32)
    h1 = jnp.maximum(h1 + b1_ref[...], 0.0)
    # trunk layer 2: Linear(H_PAD, H_PAD) + ReLU       (Dropout -> identity)
    h2 = jnp.dot(h1.astype(jnp.bfloat16), w2_ref[...],
                 preferred_element_type=jnp.float32)
    h2 = jnp.maximum(h2 + b2_ref[...], 0.0)
    # all heads fused + padded: Linear(H_PAD, OUT_PAD); f32 accumulation,
    # bf16 store (halves the dominant HBM write)
    logits = jnp.dot(h2.astype(jnp.bfloat16), wh_ref[...],
                     preferred_element_type=jnp.float32)
    out_ref[...] = (logits + bh_ref[...]).astype(out_ref.dtype)


def _choose_row_tile(batch):
    """Row tile: big enough to amortize per-step overhead, >=2 tiles so v7x's
    two TensorCores both get work, capped for v5e VMEM."""
    if batch <= 8:
        return batch                      # block == full batch dim (tiny case)
    tb = min(TB_CAP, (batch + 1) // 2)    # ~2 tiles for mid-size batches
    return ((tb + 7) // 8) * 8            # sublane multiple


def prompt_policy_forward(x, params):
    """x: [B, INPUT_DIM] float32.  Returns list of per-head logits [B, size]
    (bf16).  The fused, lane-padded [B, OUT_PAD] block could equally be
    returned to a downstream consumer to avoid the per-head slice glue."""
    w1, b1, w2, b2, wh, bh = params
    B = x.shape[0]

    tb = _choose_row_tile(B)
    num_tiles = pl.cdiv(B, tb)            # ragged last tile handled by Pallas
                                          # (OOB rows garbage, stores masked)

    def row_spec(cols):
        return pl.BlockSpec((tb, cols), lambda i: (i, 0))

    def const_spec(shape):
        # weights/biases: same block every grid step -> VMEM-resident
        return pl.BlockSpec(shape, lambda i: (0, 0))

    flops = 2 * B * (INPUT_DIM * H_PAD + H_PAD * H_PAD + H_PAD * OUT_PAD)
    bytes_accessed = (
        B * (INPUT_DIM * 4 + OUT_PAD * 2)                       # x read + out write
        + (INPUT_DIM + H_PAD + H_PAD) * H_PAD * 2                # bf16 weights
        + 3 * H_PAD * 4)                                         # f32 biases

    fused_logits = pl.pallas_call(
        _policy_kernel,
        out_shape=jax.ShapeDtypeStruct((B, OUT_PAD), jnp.bfloat16),
        grid=(num_tiles,),
        in_specs=[
            row_spec(INPUT_DIM),
            const_spec(w1.shape), const_spec(b1.shape),
            const_spec(w2.shape), const_spec(b2.shape),
            const_spec(wh.shape), const_spec(bh.shape),
        ],
        out_specs=row_spec(OUT_PAD),
        compiler_params=pltpu.CompilerParams(
            dimension_semantics=("parallel",)),   # v7x: shard batch over 2 TCs
        cost_estimate=pl.CostEstimate(
            flops=flops, transcendentals=0, bytes_accessed=bytes_accessed),
    )(x, w1, b1, w2, b2, wh, bh)

    # per-head split only (no intermediate [:B, :14] full-pass slice)
    logits, off = [], 0
    for size in BLOCK_SIZES:
        logits.append(fused_logits[:, off:off + size])
        off += size
    return logits


def init_params(key):
    """PyTorch-style (uniform +-1/sqrt(fan_in)) init, then zero-pad to
    lane-dense shapes and cast weights (MXU operands) to bf16."""
    keys = jax.random.split(key, 4 + 2 * len(BLOCK_SIZES))

    def linear(kw, kb, fan_in, fan_out):
        bound = 1.0 / jnp.sqrt(fan_in)
        w = jax.random.uniform(kw, (fan_in, fan_out), jnp.float32,
                               -bound, bound)
        b = jax.random.uniform(kb, (1, fan_out), jnp.float32, -bound, bound)
        return w, b

    w1, b1 = linear(keys[0], keys[1], INPUT_DIM, HIDDEN_SIZE)
    w2, b2 = linear(keys[2], keys[3], HIDDEN_SIZE, HIDDEN_SIZE)

    head_ws, head_bs = [], []
    for i, size in enumerate(BLOCK_SIZES):
        hw, hb = linear(keys[4 + 2 * i], keys[5 + 2 * i], HIDDEN_SIZE, size)
        head_ws.append(hw)
        head_bs.append(hb)
    wh = jnp.concatenate(head_ws, axis=1)   # [H, TOTAL_HEAD_OUT]
    bh = jnp.concatenate(head_bs, axis=1)   # [1, TOTAL_HEAD_OUT]

    # zero-pad to lane-dense shapes (padding contributes exactly 0)
    w1p = jnp.pad(w1, ((0, 0), (0, H_PAD - HIDDEN_SIZE)))
    b1p = jnp.pad(b1, ((0, 0), (0, H_PAD - HIDDEN_SIZE)))
    w2p = jnp.pad(w2, ((0, H_PAD - HIDDEN_SIZE), (0, H_PAD - HIDDEN_SIZE)))
    b2p = jnp.pad(b2, ((0, 0), (0, H_PAD - HIDDEN_SIZE)))
    whp = jnp.pad(wh, ((0, H_PAD - HIDDEN_SIZE), (0, OUT_PAD - TOTAL_HEAD_OUT)))
    bhp = jnp.pad(bh, ((0, 0), (0, OUT_PAD - TOTAL_HEAD_OUT)))

    # weights feed the MXU as bf16; biases stay f32 for the f32 epilogue
    return (w1p.astype(jnp.bfloat16), b1p,
            w2p.astype(jnp.bfloat16), b2p,
            whp.astype(jnp.bfloat16), bhp)


def reference_forward(x, params):
    """Plain-JAX reference: same bf16 operands, f32 accumulation, bf16 out."""
    w1, b1, w2, b2, wh, bh = params
    xb = x.astype(jnp.bfloat16)
    h = jnp.maximum(jnp.dot(xb, w1, preferred_element_type=jnp.float32) + b1,
                    0.0)
    h = jnp.maximum(jnp.dot(h.astype(jnp.bfloat16), w2,
                            preferred_element_type=jnp.float32) + b2, 0.0)
    fused = (jnp.dot(h.astype(jnp.bfloat16), wh,
                     preferred_element_type=jnp.float32) + bh
             ).astype(jnp.bfloat16)
    out, off = [], 0
    for size in BLOCK_SIZES:
        out.append(fused[:, off:off + size])
        off += size
    return out


def _check(logits, ref, B):
    for l, r, size in zip(logits, ref, BLOCK_SIZES):
        assert l.shape == (B, size)
        assert jnp.allclose(l.astype(jnp.float32), r.astype(jnp.float32),
                            atol=2e-2, rtol=2e-2)


if __name__ == "__main__":
    key = jax.random.PRNGKey(0)
    k_param, k_x1, k_x2 = jax.random.split(key, 3)
    params = init_params(k_param)

    # small case (B=2): single tile, block == full batch dim
    B = 2
    state = jax.random.normal(k_x1, (B, INPUT_DIM), dtype=jnp.float32)
    logits = jax.block_until_ready(prompt_policy_forward(state, params))
    _check(logits, reference_forward(state, params), B)

    # ragged multi-tile case: B not a multiple of the row tile, >1 grid step,
    # exercises the masked partial-tile path and the pipelined grid.
    B2 = 37
    state2 = jax.random.normal(k_x2, (B2, INPUT_DIM), dtype=jnp.float32)
    logits2 = jax.block_until_ready(prompt_policy_forward(state2, params))
    _check(logits2, reference_forward(state2, params), B2)

    # TODO(synk): get_actions() (Categorical sampling / epsilon-greedy /
    # log-prob & entropy bookkeeping) is host-side control flow and is
    # intentionally left outside the kernel.
    print("KERNEL_OK")
</pallas_src>

<mosaic_0001>
module attributes {stable_mosaic.version = 11 : i64} {
  func.func @_policy_kernel(%arg0: i32, %arg1: memref<2x14xf32, #tpu.memory_space<vmem>>, %arg2: memref<14x128xbf16, #tpu.memory_space<vmem>>, %arg3: memref<1x128xf32, #tpu.memory_space<vmem>>, %arg4: memref<128x128xbf16, #tpu.memory_space<vmem>>, %arg5: memref<1x128xf32, #tpu.memory_space<vmem>>, %arg6: memref<128x128xbf16, #tpu.memory_space<vmem>>, %arg7: memref<1x128xf32, #tpu.memory_space<vmem>>, %arg8: memref<2x128xbf16, #tpu.memory_space<vmem>>) attributes {dimension_semantics = [#tpu.dimension_semantics<parallel>], iteration_bounds = array<i64: 1>, scalar_prefetch = 0 : i64, scratch_operands = 0 : i64, tpu.core_type = #tpu.core_type<tc>, window_params = [{transform_indices = @transform_0, window_bounds = array<i64: 2, 14>}, {pipeline_mode = #tpu.pipeline_mode<synchronous>, transform_indices = @transform_1, window_bounds = array<i64: 14, 128>}, {pipeline_mode = #tpu.pipeline_mode<synchronous>, transform_indices = @transform_2, window_bounds = array<i64: 1, 128>}, {pipeline_mode = #tpu.pipeline_mode<synchronous>, transform_indices = @transform_3, window_bounds = array<i64: 128, 128>}, {pipeline_mode = #tpu.pipeline_mode<synchronous>, transform_indices = @transform_4, window_bounds = array<i64: 1, 128>}, {pipeline_mode = #tpu.pipeline_mode<synchronous>, transform_indices = @transform_5, window_bounds = array<i64: 128, 128>}, {pipeline_mode = #tpu.pipeline_mode<synchronous>, transform_indices = @transform_6, window_bounds = array<i64: 1, 128>}, {transform_indices = @transform_7, window_bounds = array<i64: 2, 128>}]} {
    %c0 = arith.constant 0 : index
    %c0_0 = arith.constant 0 : index
    %0 = vector.load %arg1[%c0, %c0_0] : memref<2x14xf32, #tpu.memory_space<vmem>>, vector<2x14xf32>
    %1 = arith.truncf %0 : vector<2x14xf32> to vector<2x14xbf16>
    %c0_1 = arith.constant 0 : index
    %c0_2 = arith.constant 0 : index
    %2 = vector.load %arg2[%c0_1, %c0_2] : memref<14x128xbf16, #tpu.memory_space<vmem>>, vector<14x128xbf16>
    %cst = arith.constant dense<0.000000e+00> : vector<2x128xf32>
    %3 = tpu.matmul %1, %2, %cst {dimension_numbers = #tpu.dot_dimension_numbers<[1], [0], [0], [1], [0, 0, 1, 1], [], []>} : vector<2x14xbf16>, vector<14x128xbf16>, vector<2x128xf32> -> vector<2x128xf32>
    %c0_3 = arith.constant 0 : index
    %c0_4 = arith.constant 0 : index
    %4 = vector.load %arg3[%c0_3, %c0_4] : memref<1x128xf32, #tpu.memory_space<vmem>>, vector<1x128xf32>
    %5 = vector.broadcast %4 : vector<1x128xf32> to vector<2x128xf32>
    %6 = arith.addf %3, %5 : vector<2x128xf32>
    %cst_5 = arith.constant 0.000000e+00 : f32
    %7 = vector.broadcast %cst_5 : f32 to vector<2x128xf32>
    %8 = arith.maximumf %6, %7 : vector<2x128xf32>
    %9 = arith.truncf %8 : vector<2x128xf32> to vector<2x128xbf16>
    %c0_6 = arith.constant 0 : index
    %c0_7 = arith.constant 0 : index
    %10 = vector.load %arg4[%c0_6, %c0_7] : memref<128x128xbf16, #tpu.memory_space<vmem>>, vector<128x128xbf16>
    %cst_8 = arith.constant dense<0.000000e+00> : vector<2x128xf32>
    %11 = tpu.matmul %9, %10, %cst_8 {dimension_numbers = #tpu.dot_dimension_numbers<[1], [0], [0], [1], [0, 0, 1, 1], [], []>} : vector<2x128xbf16>, vector<128x128xbf16>, vector<2x128xf32> -> vector<2x128xf32>
    %c0_9 = arith.constant 0 : index
    %c0_10 = arith.constant 0 : index
    %12 = vector.load %arg5[%c0_9, %c0_10] : memref<1x128xf32, #tpu.memory_space<vmem>>, vector<1x128xf32>
    %13 = vector.broadcast %12 : vector<1x128xf32> to vector<2x128xf32>
    %14 = arith.addf %11, %13 : vector<2x128xf32>
    %cst_11 = arith.constant 0.000000e+00 : f32
    %15 = vector.broadcast %cst_11 : f32 to vector<2x128xf32>
    %16 = arith.maximumf %14, %15 : vector<2x128xf32>
    %17 = arith.truncf %16 : vector<2x128xf32> to vector<2x128xbf16>
    %c0_12 = arith.constant 0 : index
    %c0_13 = arith.constant 0 : index
    %18 = vector.load %arg6[%c0_12, %c0_13] : memref<128x128xbf16, #tpu.memory_space<vmem>>, vector<128x128xbf16>
    %cst_14 = arith.constant dense<0.000000e+00> : vector<2x128xf32>
    %19 = tpu.matmul %17, %18, %cst_14 {dimension_numbers = #tpu.dot_dimension_numbers<[1], [0], [0], [1], [0, 0, 1, 1], [], []>} : vector<2x128xbf16>, vector<128x128xbf16>, vector<2x128xf32> -> vector<2x128xf32>
    %c0_15 = arith.constant 0 : index
    %c0_16 = arith.constant 0 : index
    %20 = vector.load %arg7[%c0_15, %c0_16] : memref<1x128xf32, #tpu.memory_space<vmem>>, vector<1x128xf32>
    %21 = vector.broadcast %20 : vector<1x128xf32> to vector<2x128xf32>
    %22 = arith.addf %19, %21 : vector<2x128xf32>
    %23 = arith.truncf %22 : vector<2x128xf32> to vector<2x128xbf16>
    %c0_17 = arith.constant 0 : index
    %c0_18 = arith.constant 0 : index
    %24 = vector.load %arg8[%c0_17, %c0_18] : memref<2x128xbf16, #tpu.memory_space<vmem>>, vector<2x128xbf16>
    tpu.vector_store %arg8[%c0_17, %c0_18], %23 {strides = array<i32>} : memref<2x128xbf16, #tpu.memory_space<vmem>>, vector<2x128xbf16>,
    return
  }
  func.func @transform_0(%arg0: i32) -> (i32, i32) {
    %c0_i32 = arith.constant 0 : i32
    %c0_i32_0 = arith.constant 0 : i32
    return %arg0, %c0_i32 : i32, i32
  }
  func.func @transform_1(%arg0: i32) -> (i32, i32) {
    %c0_i32 = arith.constant 0 : i32
    %c0_i32_0 = arith.constant 0 : i32
    %c0_i32_1 = arith.constant 0 : i32
    return %c0_i32, %c0_i32_0 : i32, i32
  }
  func.func @transform_2(%arg0: i32) -> (i32, i32) {
    %c0_i32 = arith.constant 0 : i32
    %c0_i32_0 = arith.constant 0 : i32
    %c0_i32_1 = arith.constant 0 : i32
    return %c0_i32, %c0_i32_0 : i32, i32
  }
  func.func @transform_3(%arg0: i32) -> (i32, i32) {
    %c0_i32 = arith.constant 0 : i32
    %c0_i32_0 = arith.constant 0 : i32
    %c0_i32_1 = arith.constant 0 : i32
    return %c0_i32, %c0_i32_0 : i32, i32
  }
  func.func @transform_4(%arg0: i32) -> (i32, i32) {
    %c0_i32 = arith.constant 0 : i32
    %c0_i32_0 = arith.constant 0 : i32
    %c0_i32_1 = arith.constant 0 : i32
    return %c0_i32, %c0_i32_0 : i32, i32
  }
  func.func @transform_5(%arg0: i32) -> (i32, i32) {
    %c0_i32 = arith.constant 0 : i32
    %c0_i32_0 = arith.constant 0 : i32
    %c0_i32_1 = arith.constant 0 : i32
    return %c0_i32, %c0_i32_0 : i32, i32
  }
  func.func @transform_6(%arg0: i32) -> (i32, i32) {
    %c0_i32 = arith.constant 0 : i32
    %c0_i32_0 = arith.constant 0 : i32
    %c0_i32_1 = arith.constant 0 : i32
    return %c0_i32, %c0_i32_0 : i32, i32
  }
  func.func @transform_7(%arg0: i32) -> (i32, i32) {
    %c0_i32 = arith.constant 0 : i32
    %c0_i32_0 = arith.constant 0 : i32
    return %arg0, %c0_i32 : i32, i32
  }
}

</mosaic_0001>

<llo_original>
// kernel: tpu_custom_call.1
$region0: #{tpu_custom_call.1}
  #allocation0 [shape = 'u32[]', space=smem, size = 0x4, offset = 0x4, fixed_abs, tag = 'smem constant byte address 0x4 - core index']
  #allocation1 [shape = 'u32[144,128]{1,0:T(1,128)}', space=vmem, size = 0x12000, scoped, tag = 'internal scratch']
  %s0 = inlined_call_operand.hbm [shape: f32[2,14], index: 0, kind: input, shape index: {}]
  %s1 = inlined_call_operand.hbm [shape: bf16[14,128], index: 1, kind: input, shape index: {}]
  %s2 = inlined_call_operand.vmem [shape: f32[1,128], index: 2, kind: input, shape index: {}]
  %s3 = inlined_call_operand.hbm [shape: bf16[128,128], index: 3, kind: input, shape index: {}]
  %s4 = inlined_call_operand.vmem [shape: f32[1,128], index: 4, kind: input, shape index: {}]
  %s5 = inlined_call_operand.hbm [shape: bf16[128,128], index: 5, kind: input, shape index: {}]
  %s6 = inlined_call_operand.vmem [shape: f32[1,128], index: 6, kind: input, shape index: {}]
  %s7 = inlined_call_operand.hbm [shape: bf16[2,128], index: 7, kind: output, shape index: {}]
  %s8 = sld [smem:[#allocation0]]
  $region54: #{tpu_custom_call.1} parent=0
    _
  %s10 = ssub.s32 1, %s8
  %s11 = scalar_select 0, %s10, %s8
  $region1: #{tpu_custom_call.1} parent=0
    #allocation2 [shape = 'u8[1024]{0}', space=vmem, size = 0x400, scoped, tag = 'input window, operand 0, single buffered']
    #allocation3 [shape = 's32[1]{0}', space=sflag, size = 0x4, scoped, tag = 'scoped memory for tpu_custom_call.1']
    #allocation4 [shape = 's32[1]{0}', space=sflag, size = 0x4, scoped, tag = 'scoped memory for tpu_custom_call.1']
    #allocation5 [shape = 'u8[4096]{0}', space=vmem, size = 0x1000, scoped, tag = 'input window, operand 1, single buffered']
    #allocation6 [shape = 's32[1]{0}', space=sflag, size = 0x4, scoped, tag = 'scoped memory for tpu_custom_call.1']
    #allocation7 [shape = 'u8[32768]{0}', space=vmem, size = 0x8000, scoped, tag = 'input window, operand 3, single buffered']
    #allocation8 [shape = 'u8[32768]{0}', space=vmem, size = 0x8000, scoped, tag = 'input window, operand 5, single buffered']
    #allocation9 [shape = 's32[1]{0}', space=sflag, size = 0x4, scoped, tag = 'scoped memory for tpu_custom_call.1']
    #allocation10 [shape = 'u8[512]{0}', space=vmem, size = 0x400, scoped, tag = 'output window, operand 0, single buffered']
    %12 = vsyncpa [#allocation3], 0
    %13 = vsyncpa [#allocation6], 0
    %14 = vsyncpa [#allocation9], 0
    %15 = vsyncpa [#allocation4], 0
    // Predicated region
    $region2: #{tpu_custom_call.1} parent=1 // pred_check
      _
    $region3: #{tpu_custom_call.1} parent=1 // pred_check_branch
      %17 = sbr.rel (0) target = $region5
    $region4: #{tpu_custom_call.1} parent=1 // pred_region
      %s19 = ssub.s32 32, 32
      %20 = vsyncadd [#allocation3], %s19
      %s22 = sshll.u32 [#allocation2], 4
      %s23 = int_to_ptr.vmem [resolvable:$true] %s22
      %25 = dma.hbm_to_vmem [thread:$0]  %s0, 32, %s23, [#allocation3]
    $region5: #{tpu_custom_call.1} parent=1 // pred_fallthru
      _
    // Predicated region
    $region6: #{tpu_custom_call.1} parent=1 // pred_check
      _
    $region7: #{tpu_custom_call.1} parent=1 // pred_check_branch
      %27 = sbr.rel (0) target = $region9
    $region8: #{tpu_custom_call.1} parent=1 // pred_region
      %s29 = ssub.s32 128, 128
      %30 = vsyncadd [#allocation6], %s29
      %s31 = sshll.u32 [#allocation5], 4
      %s32 = int_to_ptr.vmem [resolvable:$true] %s31
      %37 = dma.hbm_to_vmem [thread:$0]  %s1, 128, %s32, [#allocation6], 64, 64, 4
    $region9: #{tpu_custom_call.1} parent=1 // pred_fallthru
      _
    // Predicated region
    $region10: #{tpu_custom_call.1} parent=1 // pred_check
      _
    $region11: #{tpu_custom_call.1} parent=1 // pred_check_branch
      %39 = sbr.rel (0) target = $region13
    $region12: #{tpu_custom_call.1} parent=1 // pred_region
      _
    $region13: #{tpu_custom_call.1} parent=1 // pred_fallthru
      _
    // Predicated region
    $region14: #{tpu_custom_call.1} parent=1 // pred_check
      _
    $region15: #{tpu_custom_call.1} parent=1 // pred_check_branch
      %41 = sbr.rel (0) target = $region17
    $region16: #{tpu_custom_call.1} parent=1 // pred_region
      %s43 = ssub.s32 1024, 1024
      %44 = vsyncadd [#allocation6], %s43
      %s45 = sshll.u32 [#allocation7], 4
      %s46 = int_to_ptr.vmem [resolvable:$true] %s45
      %51 = dma.hbm_to_vmem [thread:$0]  %s3, 1024, %s46, [#allocation6], 64, 64, 4
    $region17: #{tpu_custom_call.1} parent=1 // pred_fallthru
      _
    // Predicated region
    $region18: #{tpu_custom_call.1} parent=1 // pred_check
      _
    $region19: #{tpu_custom_call.1} parent=1 // pred_check_branch
      %53 = sbr.rel (0) target = $region21
    $region20: #{tpu_custom_call.1} parent=1 // pred_region
      _
    $region21: #{tpu_custom_call.1} parent=1 // pred_fallthru
      _
    // Predicated region
    $region22: #{tpu_custom_call.1} parent=1 // pred_check
      _
    $region23: #{tpu_custom_call.1} parent=1 // pred_check_branch
      %55 = sbr.rel (0) target = $region25
    $region24: #{tpu_custom_call.1} parent=1 // pred_region
      %s57 = ssub.s32 1024, 1024
      %58 = vsyncadd [#allocation9], %s57
      %s59 = sshll.u32 [#allocation8], 4
      %s60 = int_to_ptr.vmem [resolvable:$true] %s59
      %65 = dma.hbm_to_vmem [thread:$0]  %s5, 1024, %s60, [#allocation9], 64, 64, 4
    $region25: #{tpu_custom_call.1} parent=1 // pred_fallthru
      _
    // Predicated region
    $region26: #{tpu_custom_call.1} parent=1 // pred_check
      _
    $region27: #{tpu_custom_call.1} parent=1 // pred_check_branch
      %67 = sbr.rel (0) target = $region29
    $region28: #{tpu_custom_call.1} parent=1 // pred_region
      _
    $region29: #{tpu_custom_call.1} parent=1 // pred_fallthru
      _
    // Predicated region
    $region30: #{tpu_custom_call.1} parent=1 // pred_check
      _
    $region31: #{tpu_custom_call.1} parent=1 // pred_check_branch
      %69 = sbr.rel (0) target = $region33
    $region32: #{tpu_custom_call.1} parent=1 // pred_region
      %70 = dma.done [#allocation3], 32
    $region33: #{tpu_custom_call.1} parent=1 // pred_fallthru
      _
    // Predicated region
    $region34: #{tpu_custom_call.1} parent=1 // pred_check
      _
    $region35: #{tpu_custom_call.1} parent=1 // pred_check_branch
      %72 = sbr.rel (0) target = $region37
    $region36: #{tpu_custom_call.1} parent=1 // pred_region
      %73 = dma.done [#allocation6], 128
    $region37: #{tpu_custom_call.1} parent=1 // pred_fallthru
      _
    // Predicated region
    $region38: #{tpu_custom_call.1} parent=1 // pred_check
      _
    $region39: #{tpu_custom_call.1} parent=1 // pred_check_branch
      %75 = sbr.rel (0) target = $region41
    $region40: #{tpu_custom_call.1} parent=1 // pred_region
      %76 = dma.done [#allocation6], 1024
    $region41: #{tpu_custom_call.1} parent=1 // pred_fallthru
      _
    // Predicated region
    $region42: #{tpu_custom_call.1} parent=1 // pred_check
      _
    $region43: #{tpu_custom_call.1} parent=1 // pred_check_branch
      %78 = sbr.rel (0) target = $region45
    $region44: #{tpu_custom_call.1} parent=1 // pred_region
      %79 = dma.done [#allocation9], 1024
    $region45: #{tpu_custom_call.1} parent=1 // pred_fallthru
      _
    %v81 = vld [vmem:[#allocation2] sm:$0x3]
    %v82 = vpack.c.bf16 %v81, %v81
    %v83 = vld [vmem:[#allocation5] sm:$0xf]
    %v84 = vld [vmem:[#allocation5 + $0x4] sm:$0x7]
    %v85 = vld [vmem:[%s2] sm:$0x1]
    %v87 = vlaneseq
    %v88 = vshrl.u32 %v87, 7
    %v89 = vsub.s32 0, %v88
    %v90 = vrot.slane %v85, %v89
    %v94 = vunpack.c.l.b16 %v83
    %v95 = vunpack.c.l.b16 %v84
    %v96 = vpack.c.b16 %v95, %v94
    %vm97 = vcmask 113664
    %v99 = vsel %vm97, %v82, 0
    %vm101 = vcmask 1046528
    %v103 = vsel %vm101, %v96, 0
    %105 = vmatprep.subr.bf16.mxu0 0
    %106 = vmatpush1.bf16.msra.mxu0 0
    %107 = vmatprep.subr.bf16.mxu0 0
    %108 = vmatpush1.bf16.msra.mxu0 0
    %109 = vmatprep.subr.bf16.mxu0 0
    %110 = vmatpush1.bf16.msra.mxu0 0
    %111 = vmatprep.subr.bf16.mxu0 0
    %112 = vmatpush1.bf16.msra.mxu0 0
    %113 = vmatprep.subr.bf16.mxu0 0
    %114 = vmatpush1.bf16.msra.mxu0 0
    %115 = vmatprep.subr.bf16.mxu0 0
    %116 = vmatpush1.bf16.msra.mxu0 0
    %117 = vmatprep.subr.bf16.mxu0 0
    %118 = vmatpush1.bf16.msra.mxu0 0
    %119 = vmatprep.subr.bf16.mxu0 0
    %120 = vmatpush1.bf16.msra.mxu0 %v103
    %121 = vmatprep.subr.bf16.mxu0 0
    %122 = vmatpush2.bf16.msra.mxu0 0
    %123 = vmatprep.subr.bf16.mxu0 0
    %124 = vmatpush2.bf16.msra.mxu0 0
    %125 = vmatprep.subr.bf16.mxu0 0
    %126 = vmatpush2.bf16.msra.mxu0 0
    %127 = vmatprep.subr.bf16.mxu0 0
    %128 = vmatpush2.bf16.msra.mxu0 0
    %129 = vmatprep.subr.bf16.mxu0 0
    %130 = vmatpush2.bf16.msra.mxu0 0
    %131 = vmatprep.subr.bf16.mxu0 0
    %132 = vmatpush2.bf16.msra.mxu0 0
    %133 = vmatprep.subr.bf16.mxu0 0
    %134 = vmatpush2.bf16.msra.mxu0 0
    %135 = vmatprep.subr.bf16.mxu0 0
    %136 = vmatpush2.bf16.msra.mxu0 0
    %137 = vmatprep.mubr.bf16.mxu0 0
    %138 = vmatmul.mubr.bf16.gmra.mxu0 %v99
    %v139 = vpop.f32.mrf.mxu0
    %v140 = vadd.f32 %v90, %v139
    %v141 = vpop.f32.mrf.mxu0
    %v142 = vpop.f32.mrf.mxu0
    %v143 = vpop.f32.mrf.mxu0
    %144 = vdwg.mxu0
    %v145 = vmax.f32 %v140, 0.0
    %v146 = vpack.c.bf16 %v145, %v145
    %v147 = vld [vmem:[#allocation7] sm:$0xf]
    %v148 = vld [vmem:[#allocation7 + $0x4] sm:$0xf]
    %v149 = vld [vmem:[#allocation7 + $0x8] sm:$0xf]
    %v150 = vld [vmem:[#allocation7 + $0xc] sm:$0xf]
    %v151 = vld [vmem:[#allocation7 + $0x10] sm:$0xf]
    %v152 = vld [vmem:[#allocation7 + $0x14] sm:$0xf]
    %v153 = vld [vmem:[#allocation7 + $0x18] sm:$0xf]
    %v154 = vld [vmem:[#allocation7 + $0x1c] sm:$0xf]
    %v155 = vld [vmem:[#allocation7 + $0x20] sm:$0xf]
    %v156 = vld [vmem:[#allocation7 + $0x24] sm:$0xf]
    %v157 = vld [vmem:[#allocation7 + $0x28] sm:$0xf]
    %v158 = vld [vmem:[#allocation7 + $0x2c] sm:$0xf]
    %v159 = vld [vmem:[#allocation7 + $0x30] sm:$0xf]
    %v160 = vld [vmem:[#allocation7 + $0x34] sm:$0xf]
    %v161 = vld [vmem:[#allocation7 + $0x38] sm:$0xf]
    %v162 = vld [vmem:[#allocation7 + $0x3c] sm:$0xf]
    %v163 = vld [vmem:[%s4] sm:$0x1]
    %v165 = vlaneseq
    %v166 = vshrl.u32 %v165, 7
    %v167 = vsub.s32 0, %v166
    %v168 = vrot.slane %v163, %v167
    %v186 = vunpack.c.l.b16 %v147
    %v187 = vunpack.c.l.b16 %v148
    %v188 = vunpack.c.l.b16 %v149
    %v189 = vunpack.c.l.b16 %v150
    %v190 = vunpack.c.l.b16 %v151
    %v191 = vunpack.c.l.b16 %v152
    %v192 = vunpack.c.l.b16 %v153
    %v193 = vunpack.c.l.b16 %v154
    %v194 = vunpack.c.l.b16 %v155
    %v195 = vunpack.c.l.b16 %v156
    %v196 = vunpack.c.l.b16 %v157
    %v197 = vunpack.c.l.b16 %v158
    %v198 = vunpack.c.l.b16 %v159
    %v199 = vunpack.c.l.b16 %v160
    %v200 = vunpack.c.l.b16 %v161
    %v201 = vunpack.c.l.b16 %v162
    %v202 = vpack.c.b16 %v187, %v186
    %v203 = vpack.c.b16 %v189, %v188
    %v204 = vpack.c.b16 %v191, %v190
    %v205 = vpack.c.b16 %v193, %v192
    %v206 = vpack.c.b16 %v195, %v194
    %v207 = vpack.c.b16 %v197, %v196
    %v208 = vpack.c.b16 %v199, %v198
    %v209 = vpack.c.b16 %v201, %v200
    %218 = vmatprep.subr.bf16.mxu0 0
    %219 = vmatpush1.bf16.msra.mxu0 %v209
    %220 = vmatprep.subr.bf16.mxu0 0
    %221 = vmatpush1.bf16.msra.mxu0 %v208
    %222 = vmatprep.subr.bf16.mxu0 0
    %223 = vmatpush1.bf16.msra.mxu0 %v207
    %224 = vmatprep.subr.bf16.mxu0 0
    %225 = vmatpush1.bf16.msra.mxu0 %v206
    %226 = vmatprep.subr.bf16.mxu0 0
    %227 = vmatpush1.bf16.msra.mxu0 %v205
    %228 = vmatprep.subr.bf16.mxu0 0
    %229 = vmatpush1.bf16.msra.mxu0 %v204
    %230 = vmatprep.subr.bf16.mxu0 0
    %231 = vmatpush1.bf16.msra.mxu0 %v203
    %232 = vmatprep.subr.bf16.mxu0 0
    %233 = vmatpush1.bf16.msra.mxu0 %v202
    %234 = vmatprep.subr.bf16.mxu0 0
    %235 = vmatpush2.bf16.msra.mxu0 0
    %236 = vmatprep.subr.bf16.mxu0 0
    %237 = vmatpush2.bf16.msra.mxu0 0
    %238 = vmatprep.subr.bf16.mxu0 0
    %239 = vmatpush2.bf16.msra.mxu0 0
    %240 = vmatprep.subr.bf16.mxu0 0
    %241 = vmatpush2.bf16.msra.mxu0 0
    %242 = vmatprep.subr.bf16.mxu0 0
    %243 = vmatpush2.bf16.msra.mxu0 0
    %244 = vmatprep.subr.bf16.mxu0 0
    %245 = vmatpush2.bf16.msra.mxu0 0
    %246 = vmatprep.subr.bf16.mxu0 0
    %247 = vmatpush2.bf16.msra.mxu0 0
    %248 = vmatprep.subr.bf16.mxu0 0
    %249 = vmatpush2.bf16.msra.mxu0 0
    %250 = vmatprep.mubr.bf16.mxu0 0
    %251 = vmatmul.mubr.bf16.gmra.mxu0 %v146
    %v252 = vpop.f32.mrf.mxu0
    %v253 = vadd.f32 %v168, %v252
    %v254 = vpop.f32.mrf.mxu0
    %v255 = vpop.f32.mrf.mxu0
    %v256 = vpop.f32.mrf.mxu0
    %257 = vdwg.mxu0
    %v258 = vmax.f32 %v253, 0.0
    %v259 = vpack.c.bf16 %v258, %v258
    %v260 = vld [vmem:[#allocation8] sm:$0xf]
    %v261 = vld [vmem:[#allocation8 + $0x4] sm:$0xf]
    %v262 = vld [vmem:[#allocation8 + $0x8] sm:$0xf]
    %v263 = vld [vmem:[#allocation8 + $0xc] sm:$0xf]
    %v264 = vld [vmem:[#allocation8 + $0x10] sm:$0xf]
    %v265 = vld [vmem:[#allocation8 + $0x14] sm:$0xf]
    %v266 = vld [vmem:[#allocation8 + $0x18] sm:$0xf]
    %v267 = vld [vmem:[#allocation8 + $0x1c] sm:$0xf]
    %v268 = vld [vmem:[#allocation8 + $0x20] sm:$0xf]
    %v269 = vld [vmem:[#allocation8 + $0x24] sm:$0xf]
    %v270 = vld [vmem:[#allocation8 + $0x28] sm:$0xf]
    %v271 = vld [vmem:[#allocation8 + $0x2c] sm:$0xf]
    %v272 = vld [vmem:[#allocation8 + $0x30] sm:$0xf]
    %v273 = vld [vmem:[#allocation8 + $0x34] sm:$0xf]
    %v274 = vld [vmem:[#allocation8 + $0x38] sm:$0xf]
    %v275 = vld [vmem:[#allocation8 + $0x3c] sm:$0xf]
    %v276 = vld [vmem:[%s6] sm:$0x1]
    %v278 = vlaneseq
    %v279 = vshrl.u32 %v278, 7
    %v280 = vsub.s32 0, %v279
    %v281 = vrot.slane %v276, %v280
    %v299 = vunpack.c.l.b16 %v260
    %v300 = vunpack.c.l.b16 %v261
    %v301 = vunpack.c.l.b16 %v262
    %v302 = vunpack.c.l.b16 %v263
    %v303 = vunpack.c.l.b16 %v264
    %v304 = vunpack.c.l.b16 %v265
    %v305 = vunpack.c.l.b16 %v266
    %v306 = vunpack.c.l.b16 %v267
    %v307 = vunpack.c.l.b16 %v268
    %v308 = vunpack.c.l.b16 %v269
    %v309 = vunpack.c.l.b16 %v270
    %v310 = vunpack.c.l.b16 %v271
    %v311 = vunpack.c.l.b16 %v272
    %v312 = vunpack.c.l.b16 %v273
    %v313 = vunpack.c.l.b16 %v274
    %v314 = vunpack.c.l.b16 %v275
    %v315 = vpack.c.b16 %v300, %v299
    %v316 = vpack.c.b16 %v302, %v301
    %v317 = vpack.c.b16 %v304, %v303
    %v318 = vpack.c.b16 %v306, %v305
    %v319 = vpack.c.b16 %v308, %v307
    %v320 = vpack.c.b16 %v310, %v309
    %v321 = vpack.c.b16 %v312, %v311
    %v322 = vpack.c.b16 %v314, %v313
    %331 = vmatprep.subr.bf16.mxu0 0
    %332 = vmatpush1.bf16.msra.mxu0 %v322
    %333 = vmatprep.subr.bf16.mxu0 0
    %334 = vmatpush1.bf16.msra.mxu0 %v321
    %335 = vmatprep.subr.bf16.mxu0 0
    %336 = vmatpush1.bf16.msra.mxu0 %v320
    %337 = vmatprep.subr.bf16.mxu0 0
    %338 = vmatpush1.bf16.msra.mxu0 %v319
    %339 = vmatprep.subr.bf16.mxu0 0
    %340 = vmatpush1.bf16.msra.mxu0 %v318
    %341 = vmatprep.subr.bf16.mxu0 0
    %342 = vmatpush1.bf16.msra.mxu0 %v317
    %343 = vmatprep.subr.bf16.mxu0 0
    %344 = vmatpush1.bf16.msra.mxu0 %v316
    %345 = vmatprep.subr.bf16.mxu0 0
    %346 = vmatpush1.bf16.msra.mxu0 %v315
    %347 = vmatprep.subr.bf16.mxu0 0
    %348 = vmatpush2.bf16.msra.mxu0 0
    %349 = vmatprep.subr.bf16.mxu0 0
    %350 = vmatpush2.bf16.msra.mxu0 0
    %351 = vmatprep.subr.bf16.mxu0 0
    %352 = vmatpush2.bf16.msra.mxu0 0
    %353 = vmatprep.subr.bf16.mxu0 0
    %354 = vmatpush2.bf16.msra.mxu0 0
    %355 = vmatprep.subr.bf16.mxu0 0
    %356 = vmatpush2.bf16.msra.mxu0 0
    %357 = vmatprep.subr.bf16.mxu0 0
    %358 = vmatpush2.bf16.msra.mxu0 0
    %359 = vmatprep.subr.bf16.mxu0 0
    %360 = vmatpush2.bf16.msra.mxu0 0
    %361 = vmatprep.subr.bf16.mxu0 0
    %362 = vmatpush2.bf16.msra.mxu0 0
    %363 = vmatprep.mubr.bf16.mxu0 0
    %364 = vmatmul.mubr.bf16.gmra.mxu0 %v259
    %v365 = vpop.f32.mrf.mxu0
    %v366 = vadd.f32 %v281, %v365
    %v367 = vpop.f32.mrf.mxu0
    %v368 = vpop.f32.mrf.mxu0
    %v369 = vpop.f32.mrf.mxu0
    %370 = vdwg.mxu0
    %v371 = vpack.c.bf16 %v366, %v366
    %372 = vst [vmem:[#allocation10] sm:$0x1] %v371
    // Predicated region
    $region46: #{tpu_custom_call.1} parent=1 // pred_check
      _
    $region47: #{tpu_custom_call.1} parent=1 // pred_check_branch
      %374 = sbr.rel (0) target = $region49
    $region48: #{tpu_custom_call.1} parent=1 // pred_region
      %s376 = ssub.s32 16, 16
      %377 = vsyncadd [#allocation4], %s376
      %s379 = sshll.u32 [#allocation10], 4
      %s380 = int_to_ptr.vmem [resolvable:$true] %s379
      %382 = dma.vmem_to_hbm [thread:$0]  %s380, 16, %s7, [#allocation4]
    $region49: #{tpu_custom_call.1} parent=1 // pred_fallthru
      _
    // Predicated region
    $region50: #{tpu_custom_call.1} parent=1 // pred_check
      _
    $region51: #{tpu_custom_call.1} parent=1 // pred_check_branch
      %384 = sbr.rel (0) target = $region53
    $region52: #{tpu_custom_call.1} parent=1 // pred_region
      %385 = dma.done [#allocation4], 16
    $region53: #{tpu_custom_call.1} parent=1 // pred_fallthru
      _
    %386 = vsyncpa [#allocation3], 1
    %387 = vsyncpa [#allocation6], 1
    %388 = vsyncpa [#allocation9], 1
    %389 = vsyncpa [#allocation4], 1

</llo_original>
